<compile_context>
chip_gen: v6e
topology: v6e:2x2x1
jax: 0.10.0
libtpu: 0.0.40
codegen_flags: <defaults>
</compile_context>

<pallas_src>
import jax
import jax.numpy as jnp
from jax.experimental import pallas as pl
from jax.experimental.pallas import tpu as pltpu


_SUBLANE = 8  # pad the C*K*K axis to a multiple of the sublane count


# ----------------------------- helpers ------------------------------------- #

def _output_size(in_size, kernel_size, stride, padding):
    return (in_size + 2 * padding - kernel_size) // stride + 1


def extract_patches_flat(x, kernel_size, stride, padding, ck_padded):
    """im2col matching torch unfold(2,K,s).unfold(3,K,s).view(..., K*K),
    flattened to a lane-dense (N, C*K*K, OH*OW) layout, zero-padded on CK."""
    N, C, H, W = x.shape
    K, s, p = kernel_size, stride, padding
    OH = _output_size(H, K, s, p)
    OW = _output_size(W, K, s, p)
    xp = jnp.pad(x, ((0, 0), (0, 0), (p, p), (p, p)))
    cols = []
    for i in range(K):            # kernel row index (matches torch flatten order)
        for j in range(K):        # kernel col index
            cols.append(xp[:, :, i:i + s * (OH - 1) + 1:s, j:j + s * (OW - 1) + 1:s])
    patches = jnp.stack(cols, axis=2)                 # (N, C, K*K, OH, OW)
    patches = patches.reshape(N, C * K * K, OH * OW)  # c-major, k-minor, lane-dense
    ck = C * K * K
    if ck_padded > ck:
        patches = jnp.pad(patches, ((0, 0), (0, ck_padded - ck), (0, 0)))
    return patches, OH, OW


# ----------------------------- Pallas kernel ------------------------------- #

def _fused_lc_bn_relu_kernel(gamma_ref, beta_ref, p_ref, w_ref, o_ref):
    # p_ref:     (N,  CKp, S)  im2col patches, full batch
    # w_ref:     (OC, CKp, S)  unshared (per-position) weights, all channels
    # gamma/beta:(1,  OC,  1)  BN affine params
    # o_ref:     (N,  OC,  S)  fused output (lane-dense, full-sublane stores)
    N, CKp, S = p_ref.shape
    OC = w_ref.shape[0]

    p = p_ref[...]                                     # (N, CKp, S)
    w = w_ref[...]                                     # (OC, CKp, S)

    # ---- LocalConnect: dense VALU product, single hoisted CK reduce ---------
    # (padded CK rows are zero in both operands -> contribute nothing)
    prod = p[:, None, :, :] * w[None, :, :, :]         # (N, OC, CKp, S)
    acc = jnp.sum(prod, axis=2)                        # (N, OC, S), f32
    # TODO(synk): for large C*K*K, stream this as a lax.fori_loop over CK chunks
    # with a (N, OC, CHUNK, S) carry + one final reduce (bounds vreg/VMEM pressure).

    # ---- BatchNorm (training-mode, biased var, per-channel stats) + ReLU ----
    inv_count = 1.0 / float(N * S)
    mean = jnp.sum(jnp.sum(acc, axis=2, keepdims=True),
                   axis=0, keepdims=True) * inv_count              # (1, OC, 1)
    ex2 = jnp.sum(jnp.sum(acc * acc, axis=2, keepdims=True),
                  axis=0, keepdims=True) * inv_count               # (1, OC, 1)
    var = jnp.maximum(ex2 - mean * mean, 0.0)          # guard cancellation -> NaN
    scale = jax.lax.rsqrt(var + 1e-5) * gamma_ref[...]             # (1, OC, 1)
    shift = beta_ref[...] - mean * scale                           # (1, OC, 1)
    o_ref[...] = jnp.maximum(acc * scale + shift, 0.0).astype(o_ref.dtype)


def fused_local_connect_bn_relu(patches, weight_flat, gamma, beta):
    """patches: (N, CKp, S); weight_flat: (OC, CKp, S);
    gamma/beta: (1, OC, 1) -> (N, OC, S)."""
    N, CKp, S = patches.shape
    OC = weight_flat.shape[0]

    flops = 2 * N * OC * CKp * S + 8 * N * OC * S          # mul-add + BN/ReLU chain
    bytes_accessed = 4 * (N * CKp * S + OC * CKp * S + N * OC * S + 2 * OC)

    return pl.pallas_call(
        _fused_lc_bn_relu_kernel,
        out_shape=jax.ShapeDtypeStruct((N, OC, S), patches.dtype),
        grid_spec=pltpu.PrefetchScalarGridSpec(
            num_scalar_prefetch=0,
            grid=(1,),                                       # single step: no pipeline overhead
            in_specs=[
                pl.BlockSpec((1, OC, 1), lambda i: (0, 0, 0)),      # gamma
                pl.BlockSpec((1, OC, 1), lambda i: (0, 0, 0)),      # beta
                pl.BlockSpec((N, CKp, S), lambda i: (0, 0, 0)),     # patches
                pl.BlockSpec((OC, CKp, S), lambda i: (0, 0, 0)),    # weights
            ],
            out_specs=pl.BlockSpec((N, OC, S), lambda i: (0, 0, 0)),
        ),
        compiler_params=pltpu.CompilerParams(
            dimension_semantics=("arbitrary",),
            vmem_limit_bytes=32 * 1024 * 1024,
        ),
        cost_estimate=pl.CostEstimate(
            flops=flops, transcendentals=OC, bytes_accessed=bytes_accessed),
    )(gamma, beta, patches, weight_flat)


# ------------------------------ module wrapper ------------------------------ #

class LocalConnectLayerPallas:
    def __init__(self, in_channels, out_channels, input_img_size,
                 kernel_size, stride, padding, key):
        self.in_channels = in_channels
        self.out_channels = out_channels
        self.kernel_size = kernel_size
        self.stride = stride
        self.padding = padding
        oh = _output_size(input_img_size, kernel_size, stride, padding)
        self.oh = oh
        k2 = kernel_size ** 2
        ck = in_channels * k2
        self.ck_padded = ((ck + _SUBLANE - 1) // _SUBLANE) * _SUBLANE
        # torch.randn(1, OC, IC, OH, OW, K*K), deterministic init
        self.weight = jax.random.normal(
            key, (1, out_channels, in_channels, oh, oh, k2), dtype=jnp.float32)
        # Hoisted constant reshape: (OC, IC, OH, OW, K2) -> (OC, IC*K2, OH*OW),
        # c-major / k-minor to match patch stacking order, zero-padded on CK.
        w = self.weight[0].transpose(0, 1, 4, 2, 3).reshape(out_channels, ck, oh * oh)
        self.weight_flat = jnp.pad(w, ((0, 0), (0, self.ck_padded - ck), (0, 0)))
        # fresh nn.BatchNorm2d params
        self.gamma = jnp.ones((out_channels,), jnp.float32)
        self.beta = jnp.zeros((out_channels,), jnp.float32)
        self.gamma_k = self.gamma.reshape(1, out_channels, 1)
        self.beta_k = self.beta.reshape(1, out_channels, 1)

    def __call__(self, x):
        N = x.shape[0]
        patches, OH, OW = extract_patches_flat(
            x, self.kernel_size, self.stride, self.padding, self.ck_padded)
        out = fused_local_connect_bn_relu(
            patches, self.weight_flat, self.gamma_k, self.beta_k)   # (N, OC, OH*OW)
        return out.reshape(N, self.out_channels, OH, OW)            # free minor-dim split


# --------------------------------- main ------------------------------------ #

def _reference(x, weight, gamma, beta, kernel_size, stride, padding):
    """Plain-JAX reference mirroring the torch forward (training-mode BN)."""
    N, C, H, W = x.shape
    K, s, p = kernel_size, stride, padding
    OH = _output_size(H, K, s, p)
    OW = _output_size(W, K, s, p)
    xp = jnp.pad(x, ((0, 0), (0, 0), (p, p), (p, p)))
    cols = []
    for i in range(K):
        for j in range(K):
            cols.append(xp[:, :, i:i + s * (OH - 1) + 1:s, j:j + s * (OW - 1) + 1:s])
    patches = jnp.stack(cols, axis=-1)                 # (N, C, OH, OW, K*K)
    out = jnp.einsum('ncpqk,ocpqk->nopq', patches, weight[0])
    mean = out.mean(axis=(0, 2, 3), keepdims=True)
    var = out.var(axis=(0, 2, 3), keepdims=True)       # biased
    out = (out - mean) / jnp.sqrt(var + 1e-5)
    out = out * gamma.reshape(1, -1, 1, 1) + beta.reshape(1, -1, 1, 1)
    return jnp.maximum(out, 0.0)


if __name__ == "__main__":
    # small shapes consistent with the module
    batch, in_channels, out_channels = 2, 4, 8
    input_img_size, kernel_size, stride, padding = 16, 3, 1, 1

    key = jax.random.PRNGKey(0)
    k_x, k_w = jax.random.split(key)
    x = jax.random.normal(k_x, (batch, in_channels, input_img_size, input_img_size),
                          dtype=jnp.float32)

    layer = LocalConnectLayerPallas(in_channels, out_channels, input_img_size,
                                    kernel_size, stride, padding, k_w)

    out = jax.block_until_ready(layer(x))

    ref = _reference(x, layer.weight, layer.gamma, layer.beta,
                     kernel_size, stride, padding)
    assert out.shape == ref.shape
    assert jnp.allclose(out, ref, atol=1e-4, rtol=1e-4)

    print("KERNEL_OK")
</pallas_src>

<mosaic_0001>
module attributes {stable_mosaic.version = 11 : i64} {
  func.func @_fused_lc_bn_relu_kernel(%arg0: i32, %arg1: memref<1x8x1xf32, #tpu.memory_space<vmem>>, %arg2: memref<1x8x1xf32, #tpu.memory_space<vmem>>, %arg3: memref<2x40x256xf32, #tpu.memory_space<vmem>>, %arg4: memref<8x40x256xf32, #tpu.memory_space<vmem>>, %arg5: memref<2x8x256xf32, #tpu.memory_space<vmem>>) attributes {dimension_semantics = [#tpu.dimension_semantics<arbitrary>], iteration_bounds = array<i64: 1>, scalar_prefetch = 0 : i64, scratch_operands = 0 : i64, tpu.core_type = #tpu.core_type<tc>, window_params = [{pipeline_mode = #tpu.pipeline_mode<synchronous>, transform_indices = @transform_0, window_bounds = array<i64: 1, 8, 1>}, {pipeline_mode = #tpu.pipeline_mode<synchronous>, transform_indices = @transform_1, window_bounds = array<i64: 1, 8, 1>}, {pipeline_mode = #tpu.pipeline_mode<synchronous>, transform_indices = @transform_2, window_bounds = array<i64: 2, 40, 256>}, {pipeline_mode = #tpu.pipeline_mode<synchronous>, transform_indices = @transform_3, window_bounds = array<i64: 8, 40, 256>}, {pipeline_mode = #tpu.pipeline_mode<synchronous>, transform_indices = @transform_4, window_bounds = array<i64: 2, 8, 256>}]} {
    %c0 = arith.constant 0 : index
    %c0_0 = arith.constant 0 : index
    %c0_1 = arith.constant 0 : index
    %0 = vector.load %arg3[%c0, %c0_0, %c0_1] : memref<2x40x256xf32, #tpu.memory_space<vmem>>, vector<2x40x256xf32>
    %c0_2 = arith.constant 0 : index
    %c0_3 = arith.constant 0 : index
    %c0_4 = arith.constant 0 : index
    %1 = vector.load %arg4[%c0_2, %c0_3, %c0_4] : memref<8x40x256xf32, #tpu.memory_space<vmem>>, vector<8x40x256xf32>
    %2 = vector.shape_cast %0 : vector<2x40x256xf32> to vector<2x1x40x256xf32>
    %3 = vector.shape_cast %1 : vector<8x40x256xf32> to vector<1x8x40x256xf32>
    %4 = vector.broadcast %2 : vector<2x1x40x256xf32> to vector<2x8x40x256xf32>
    %5 = vector.broadcast %3 : vector<1x8x40x256xf32> to vector<2x8x40x256xf32>
    %6 = arith.mulf %4, %5 : vector<2x8x40x256xf32>
    %cst = arith.constant dense<0.000000e+00> : vector<2x8x256xf32>
    %7 = vector.multi_reduction <add>, %6, %cst [2] : vector<2x8x40x256xf32> to vector<2x8x256xf32>
    %cst_5 = arith.constant dense<0.000000e+00> : vector<2x8xf32>
    %8 = vector.multi_reduction <add>, %7, %cst_5 [2] : vector<2x8x256xf32> to vector<2x8xf32>
    %9 = vector.shape_cast %8 : vector<2x8xf32> to vector<2x8x1xf32>
    %cst_6 = arith.constant dense<0.000000e+00> : vector<8x1xf32>
    %10 = vector.multi_reduction <add>, %9, %cst_6 [0] : vector<2x8x1xf32> to vector<8x1xf32>
    %11 = vector.shape_cast %10 : vector<8x1xf32> to vector<1x8x1xf32>
    %cst_7 = arith.constant 0.001953125 : f32
    %12 = vector.broadcast %cst_7 : f32 to vector<1x8x1xf32>
    %13 = arith.mulf %11, %12 : vector<1x8x1xf32>
    %14 = arith.mulf %7, %7 : vector<2x8x256xf32>
    %cst_8 = arith.constant dense<0.000000e+00> : vector<2x8xf32>
    %15 = vector.multi_reduction <add>, %14, %cst_8 [2] : vector<2x8x256xf32> to vector<2x8xf32>
    %16 = vector.shape_cast %15 : vector<2x8xf32> to vector<2x8x1xf32>
    %cst_9 = arith.constant dense<0.000000e+00> : vector<8x1xf32>
    %17 = vector.multi_reduction <add>, %16, %cst_9 [0] : vector<2x8x1xf32> to vector<8x1xf32>
    %18 = vector.shape_cast %17 : vector<8x1xf32> to vector<1x8x1xf32>
    %cst_10 = arith.constant 0.001953125 : f32
    %19 = vector.broadcast %cst_10 : f32 to vector<1x8x1xf32>
    %20 = arith.mulf %18, %19 : vector<1x8x1xf32>
    %21 = arith.mulf %13, %13 : vector<1x8x1xf32>
    %22 = arith.subf %20, %21 : vector<1x8x1xf32>
    %cst_11 = arith.constant 0.000000e+00 : f32
    %23 = vector.broadcast %cst_11 : f32 to vector<1x8x1xf32>
    %24 = arith.maximumf %22, %23 : vector<1x8x1xf32>
    %cst_12 = arith.constant 9.99999974E-6 : f32
    %25 = vector.broadcast %cst_12 : f32 to vector<1x8x1xf32>
    %26 = arith.addf %24, %25 : vector<1x8x1xf32>
    %27 = math.rsqrt %26 : vector<1x8x1xf32>
    %c0_13 = arith.constant 0 : index
    %c0_14 = arith.constant 0 : index
    %c0_15 = arith.constant 0 : index
    %28 = vector.load %arg1[%c0_13, %c0_14, %c0_15] : memref<1x8x1xf32, #tpu.memory_space<vmem>>, vector<1x8x1xf32>
    %29 = arith.mulf %27, %28 : vector<1x8x1xf32>
    %c0_16 = arith.constant 0 : index
    %c0_17 = arith.constant 0 : index
    %c0_18 = arith.constant 0 : index
    %30 = vector.load %arg2[%c0_16, %c0_17, %c0_18] : memref<1x8x1xf32, #tpu.memory_space<vmem>>, vector<1x8x1xf32>
    %31 = arith.mulf %13, %29 : vector<1x8x1xf32>
    %32 = arith.subf %30, %31 : vector<1x8x1xf32>
    %33 = vector.broadcast %29 : vector<1x8x1xf32> to vector<2x8x256xf32>
    %34 = arith.mulf %7, %33 : vector<2x8x256xf32>
    %35 = vector.broadcast %32 : vector<1x8x1xf32> to vector<2x8x256xf32>
    %36 = arith.addf %34, %35 : vector<2x8x256xf32>
    %cst_19 = arith.constant 0.000000e+00 : f32
    %37 = vector.broadcast %cst_19 : f32 to vector<2x8x256xf32>
    %38 = arith.maximumf %36, %37 : vector<2x8x256xf32>
    %c0_20 = arith.constant 0 : index
    %c0_21 = arith.constant 0 : index
    %c0_22 = arith.constant 0 : index
    %39 = vector.load %arg5[%c0_20, %c0_21, %c0_22] : memref<2x8x256xf32, #tpu.memory_space<vmem>>, vector<2x8x256xf32>
    tpu.vector_store %arg5[%c0_20, %c0_21, %c0_22], %38 {strides = array<i32>} : memref<2x8x256xf32, #tpu.memory_space<vmem>>, vector<2x8x256xf32>,
    return
  }
  func.func @transform_0(%arg0: i32) -> (i32, i32, i32) {
    %c0_i32 = arith.constant 0 : i32
    %c0_i32_0 = arith.constant 0 : i32
    %c0_i32_1 = arith.constant 0 : i32
    %c0_i32_2 = arith.constant 0 : i32
    return %c0_i32, %c0_i32_0, %c0_i32_1 : i32, i32, i32
  }
  func.func @transform_1(%arg0: i32) -> (i32, i32, i32) {
    %c0_i32 = arith.constant 0 : i32
    %c0_i32_0 = arith.constant 0 : i32
    %c0_i32_1 = arith.constant 0 : i32
    %c0_i32_2 = arith.constant 0 : i32
    return %c0_i32, %c0_i32_0, %c0_i32_1 : i32, i32, i32
  }
  func.func @transform_2(%arg0: i32) -> (i32, i32, i32) {
    %c0_i32 = arith.constant 0 : i32
    %c0_i32_0 = arith.constant 0 : i32
    %c0_i32_1 = arith.constant 0 : i32
    %c0_i32_2 = arith.constant 0 : i32
    return %c0_i32, %c0_i32_0, %c0_i32_1 : i32, i32, i32
  }
  func.func @transform_3(%arg0: i32) -> (i32, i32, i32) {
    %c0_i32 = arith.constant 0 : i32
    %c0_i32_0 = arith.constant 0 : i32
    %c0_i32_1 = arith.constant 0 : i32
    %c0_i32_2 = arith.constant 0 : i32
    return %c0_i32, %c0_i32_0, %c0_i32_1 : i32, i32, i32
  }
  func.func @transform_4(%arg0: i32) -> (i32, i32, i32) {
    %c0_i32 = arith.constant 0 : i32
    %c0_i32_0 = arith.constant 0 : i32
    %c0_i32_1 = arith.constant 0 : i32
    %c0_i32_2 = arith.constant 0 : i32
    return %c0_i32, %c0_i32_0, %c0_i32_1 : i32, i32, i32
  }
}

</mosaic_0001>

<llo_original>
// kernel: tpu_custom_call.1
$region0: #{tpu_custom_call.1}
  #allocation0 [shape = 'u32[]', space=smem, size = 0x4, offset = 0x4, fixed_abs, tag = 'smem constant byte address 0x4 - core index']
  #allocation1 [shape = 'u32[144,128]{1,0:T(1,128)}', space=vmem, size = 0x12000, scoped, tag = 'internal scratch']
  %s0 = inlined_call_operand.vmem [shape: f32[1,8,1], index: 0, kind: input, shape index: {}]
  %s1 = inlined_call_operand.vmem [shape: f32[1,8,1], index: 1, kind: input, shape index: {}]
  %s2 = inlined_call_operand.hbm [shape: f32[2,40,256], index: 2, kind: input, shape index: {}]
  %s3 = inlined_call_operand.hbm [shape: f32[8,40,256], index: 3, kind: input, shape index: {}]
  %s4 = inlined_call_operand.hbm [shape: f32[2,8,256], index: 4, kind: output, shape index: {}]
  %s5 = sld [smem:[#allocation0]]
  $region34: #{tpu_custom_call.1} parent=0
    _
  %s7 = ssub.s32 1, %s5
  %s8 = scalar_select 0, %s7, %s5
  $region1: #{tpu_custom_call.1} parent=0
    #allocation2 [shape = 'u8[81920]{0}', space=vmem, size = 0x14000, scoped, tag = 'input window, operand 2, single buffered']
    #allocation3 [shape = 's32[1]{0}', space=sflag, size = 0x4, scoped, tag = 'scoped memory for tpu_custom_call.1']
    #allocation4 [shape = 's32[1]{0}', space=sflag, size = 0x4, scoped, tag = 'scoped memory for tpu_custom_call.1']
    #allocation5 [shape = 'u8[327680]{0}', space=vmem, size = 0x50000, scoped, tag = 'input window, operand 3, single buffered']
    #allocation6 [shape = 's32[1]{0}', space=sflag, size = 0x4, scoped, tag = 'scoped memory for tpu_custom_call.1']
    #allocation7 [shape = 'u8[16384]{0}', space=vmem, size = 0x4000, scoped, tag = 'output window, operand 0, single buffered']
    %9 = vsyncpa [#allocation3], 0
    %10 = vsyncpa [#allocation6], 0
    %11 = vsyncpa [#allocation4], 0
    // Predicated region
    $region2: #{tpu_custom_call.1} parent=1 // pred_check
      _
    $region3: #{tpu_custom_call.1} parent=1 // pred_check_branch
      %13 = sbr.rel (0) target = $region5
    $region4: #{tpu_custom_call.1} parent=1 // pred_region
      _
    $region5: #{tpu_custom_call.1} parent=1 // pred_fallthru
      _
    // Predicated region
    $region6: #{tpu_custom_call.1} parent=1 // pred_check
      _
    $region7: #{tpu_custom_call.1} parent=1 // pred_check_branch
      %15 = sbr.rel (0) target = $region9
    $region8: #{tpu_custom_call.1} parent=1 // pred_region
      _
    $region9: #{tpu_custom_call.1} parent=1 // pred_fallthru
      _
    // Predicated region
    $region10: #{tpu_custom_call.1} parent=1 // pred_check
      _
    $region11: #{tpu_custom_call.1} parent=1 // pred_check_branch
      %17 = sbr.rel (0) target = $region13
    $region12: #{tpu_custom_call.1} parent=1 // pred_region
      %s19 = ssub.s32 2560, 2560
      %20 = vsyncadd [#allocation3], %s19
      %s21 = sshll.u32 [#allocation2], 4
      %s22 = int_to_ptr.vmem [resolvable:$true] %s21
      %27 = dma.hbm_to_vmem [thread:$0]  %s2, 2560, %s22, [#allocation3], 256, 256, 16
    $region13: #{tpu_custom_call.1} parent=1 // pred_fallthru
      _
    // Predicated region
    $region14: #{tpu_custom_call.1} parent=1 // pred_check
      _
    $region15: #{tpu_custom_call.1} parent=1 // pred_check_branch
      %29 = sbr.rel (0) target = $region17
    $region16: #{tpu_custom_call.1} parent=1 // pred_region
      %s31 = ssub.s32 10240, 10240
      %32 = vsyncadd [#allocation6], %s31
      %s33 = sshll.u32 [#allocation5], 4
      %s34 = int_to_ptr.vmem [resolvable:$true] %s33
      %39 = dma.hbm_to_vmem [thread:$0]  %s3, 10240, %s34, [#allocation6], 256, 256, 16
    $region17: #{tpu_custom_call.1} parent=1 // pred_fallthru
      _
    // Predicated region
    $region18: #{tpu_custom_call.1} parent=1 // pred_check
      _
    $region19: #{tpu_custom_call.1} parent=1 // pred_check_branch
      %41 = sbr.rel (0) target = $region21
    $region20: #{tpu_custom_call.1} parent=1 // pred_region
      %42 = dma.done [#allocation3], 2560
    $region21: #{tpu_custom_call.1} parent=1 // pred_fallthru
      _
    // Predicated region
    $region22: #{tpu_custom_call.1} parent=1 // pred_check
      _
    $region23: #{tpu_custom_call.1} parent=1 // pred_check_branch
      %44 = sbr.rel (0) target = $region25
    $region24: #{tpu_custom_call.1} parent=1 // pred_region
      %45 = dma.done [#allocation6], 10240
    $region25: #{tpu_custom_call.1} parent=1 // pred_fallthru
      _
    %v46 = vld [vmem:[#allocation2] sm:$0xff]
    %v47 = vld [vmem:[#allocation2 + $0x8] sm:$0xff]
    %v48 = vld [vmem:[#allocation2 + $0x10] sm:$0xff]
    %v49 = vld [vmem:[#allocation2 + $0x18] sm:$0xff]
    %v50 = vld [vmem:[#allocation2 + $0x20] sm:$0xff]
    %v51 = vld [vmem:[#allocation2 + $0x28] sm:$0xff]
    %v52 = vld [vmem:[#allocation2 + $0x30] sm:$0xff]
    %v53 = vld [vmem:[#allocation2 + $0x38] sm:$0xff]
    %v54 = vld [vmem:[#allocation2 + $0x40] sm:$0xff]
    %v55 = vld [vmem:[#allocation2 + $0x48] sm:$0xff]
    %v56 = vld [vmem:[#allocation2 + $0x50] sm:$0xff]
    %v57 = vld [vmem:[#allocation2 + $0x58] sm:$0xff]
    %v58 = vld [vmem:[#allocation2 + $0x60] sm:$0xff]
    %v59 = vld [vmem:[#allocation2 + $0x68] sm:$0xff]
    %v60 = vld [vmem:[#allocation2 + $0x70] sm:$0xff]
    %v61 = vld [vmem:[#allocation2 + $0x78] sm:$0xff]
    %v62 = vld [vmem:[#allocation2 + $0x80] sm:$0xff]
    %v63 = vld [vmem:[#allocation2 + $0x88] sm:$0xff]
    %v64 = vld [vmem:[#allocation2 + $0x90] sm:$0xff]
    %v65 = vld [vmem:[#allocation2 + $0x98] sm:$0xff]
    %v66 = vld [vmem:[#allocation5] sm:$0xff]
    %v67 = vld [vmem:[#allocation5 + $0x8] sm:$0xff]
    %v68 = vld [vmem:[#allocation5 + $0x10] sm:$0xff]
    %v69 = vld [vmem:[#allocation5 + $0x18] sm:$0xff]
    %v70 = vld [vmem:[#allocation5 + $0x20] sm:$0xff]
    %v71 = vld [vmem:[#allocation5 + $0x28] sm:$0xff]
    %v72 = vld [vmem:[#allocation5 + $0x30] sm:$0xff]
    %v73 = vld [vmem:[#allocation5 + $0x38] sm:$0xff]
    %v74 = vld [vmem:[#allocation5 + $0x40] sm:$0xff]
    %v75 = vld [vmem:[#allocation5 + $0x48] sm:$0xff]
    %v76 = vld [vmem:[#allocation5 + $0x50] sm:$0xff]
    %v77 = vld [vmem:[#allocation5 + $0x58] sm:$0xff]
    %v78 = vld [vmem:[#allocation5 + $0x60] sm:$0xff]
    %v79 = vld [vmem:[#allocation5 + $0x68] sm:$0xff]
    %v80 = vld [vmem:[#allocation5 + $0x70] sm:$0xff]
    %v81 = vld [vmem:[#allocation5 + $0x78] sm:$0xff]
    %v82 = vld [vmem:[#allocation5 + $0x80] sm:$0xff]
    %v83 = vld [vmem:[#allocation5 + $0x88] sm:$0xff]
    %v84 = vld [vmem:[#allocation5 + $0x90] sm:$0xff]
    %v85 = vld [vmem:[#allocation5 + $0x98] sm:$0xff]
    %v86 = vld [vmem:[#allocation5 + $0xa0] sm:$0xff]
    %v87 = vld [vmem:[#allocation5 + $0xa8] sm:$0xff]
    %v88 = vld [vmem:[#allocation5 + $0xb0] sm:$0xff]
    %v89 = vld [vmem:[#allocation5 + $0xb8] sm:$0xff]
    %v90 = vld [vmem:[#allocation5 + $0xc0] sm:$0xff]
    %v91 = vld [vmem:[#allocation5 + $0xc8] sm:$0xff]
    %v92 = vld [vmem:[#allocation5 + $0xd0] sm:$0xff]
    %v93 = vld [vmem:[#allocation5 + $0xd8] sm:$0xff]
    %v94 = vld [vmem:[#allocation5 + $0xe0] sm:$0xff]
    %v95 = vld [vmem:[#allocation5 + $0xe8] sm:$0xff]
    %v96 = vld [vmem:[#allocation5 + $0xf0] sm:$0xff]
    %v97 = vld [vmem:[#allocation5 + $0xf8] sm:$0xff]
    %v98 = vld [vmem:[#allocation5 + $0x100] sm:$0xff]
    %v99 = vld [vmem:[#allocation5 + $0x108] sm:$0xff]
    %v100 = vld [vmem:[#allocation5 + $0x110] sm:$0xff]
    %v101 = vld [vmem:[#allocation5 + $0x118] sm:$0xff]
    %v102 = vld [vmem:[#allocation5 + $0x120] sm:$0xff]
    %v103 = vld [vmem:[#allocation5 + $0x128] sm:$0xff]
    %v104 = vld [vmem:[#allocation5 + $0x130] sm:$0xff]
    %v105 = vld [vmem:[#allocation5 + $0x138] sm:$0xff]
    %v106 = vld [vmem:[#allocation5 + $0x140] sm:$0xff]
    %v107 = vld [vmem:[#allocation5 + $0x148] sm:$0xff]
    %v108 = vld [vmem:[#allocation5 + $0x150] sm:$0xff]
    %v109 = vld [vmem:[#allocation5 + $0x158] sm:$0xff]
    %v110 = vld [vmem:[#allocation5 + $0x160] sm:$0xff]
    %v111 = vld [vmem:[#allocation5 + $0x168] sm:$0xff]
    %v112 = vld [vmem:[#allocation5 + $0x170] sm:$0xff]
    %v113 = vld [vmem:[#allocation5 + $0x178] sm:$0xff]
    %v114 = vld [vmem:[#allocation5 + $0x180] sm:$0xff]
    %v115 = vld [vmem:[#allocation5 + $0x188] sm:$0xff]
    %v116 = vld [vmem:[#allocation5 + $0x190] sm:$0xff]
    %v117 = vld [vmem:[#allocation5 + $0x198] sm:$0xff]
    %v118 = vld [vmem:[#allocation5 + $0x1a0] sm:$0xff]
    %v119 = vld [vmem:[#allocation5 + $0x1a8] sm:$0xff]
    %v120 = vld [vmem:[#allocation5 + $0x1b0] sm:$0xff]
    %v121 = vld [vmem:[#allocation5 + $0x1b8] sm:$0xff]
    %v122 = vld [vmem:[#allocation5 + $0x1c0] sm:$0xff]
    %v123 = vld [vmem:[#allocation5 + $0x1c8] sm:$0xff]
    %v124 = vld [vmem:[#allocation5 + $0x1d0] sm:$0xff]
    %v125 = vld [vmem:[#allocation5 + $0x1d8] sm:$0xff]
    %v126 = vld [vmem:[#allocation5 + $0x1e0] sm:$0xff]
    %v127 = vld [vmem:[#allocation5 + $0x1e8] sm:$0xff]
    %v128 = vld [vmem:[#allocation5 + $0x1f0] sm:$0xff]
    %v129 = vld [vmem:[#allocation5 + $0x1f8] sm:$0xff]
    %v130 = vld [vmem:[#allocation5 + $0x200] sm:$0xff]
    %v131 = vld [vmem:[#allocation5 + $0x208] sm:$0xff]
    %v132 = vld [vmem:[#allocation5 + $0x210] sm:$0xff]
    %v133 = vld [vmem:[#allocation5 + $0x218] sm:$0xff]
    %v134 = vld [vmem:[#allocation5 + $0x220] sm:$0xff]
    %v135 = vld [vmem:[#allocation5 + $0x228] sm:$0xff]
    %v136 = vld [vmem:[#allocation5 + $0x230] sm:$0xff]
    %v137 = vld [vmem:[#allocation5 + $0x238] sm:$0xff]
    %v138 = vld [vmem:[#allocation5 + $0x240] sm:$0xff]
    %v139 = vld [vmem:[#allocation5 + $0x248] sm:$0xff]
    %v140 = vld [vmem:[#allocation5 + $0x250] sm:$0xff]
    %v141 = vld [vmem:[#allocation5 + $0x258] sm:$0xff]
    %v142 = vld [vmem:[#allocation5 + $0x260] sm:$0xff]
    %v143 = vld [vmem:[#allocation5 + $0x268] sm:$0xff]
    %v144 = vld [vmem:[#allocation5 + $0x270] sm:$0xff]
    %v145 = vld [vmem:[#allocation5 + $0x278] sm:$0xff]
    %v146 = vmul.f32 %v46, %v66
    %v147 = vmul.f32 %v47, %v67
    %v148 = vmul.f32 %v48, %v68
    %v149 = vmul.f32 %v49, %v69
    %v150 = vmul.f32 %v50, %v70
    %v151 = vmul.f32 %v51, %v71
    %v152 = vmul.f32 %v52, %v72
    %v153 = vmul.f32 %v53, %v73
    %v154 = vmul.f32 %v54, %v74
    %v155 = vmul.f32 %v55, %v75
    %v156 = vmul.f32 %v46, %v76
    %v157 = vmul.f32 %v47, %v77
    %v158 = vmul.f32 %v48, %v78
    %v159 = vmul.f32 %v49, %v79
    %v160 = vmul.f32 %v50, %v80
    %v161 = vmul.f32 %v51, %v81
    %v162 = vmul.f32 %v52, %v82
    %v163 = vmul.f32 %v53, %v83
    %v164 = vmul.f32 %v54, %v84
    %v165 = vmul.f32 %v55, %v85
    %v166 = vmul.f32 %v46, %v86
    %v167 = vmul.f32 %v47, %v87
    %v168 = vmul.f32 %v48, %v88
    %v169 = vmul.f32 %v49, %v89
    %v170 = vmul.f32 %v50, %v90
    %v171 = vmul.f32 %v51, %v91
    %v172 = vmul.f32 %v52, %v92
    %v173 = vmul.f32 %v53, %v93
    %v174 = vmul.f32 %v54, %v94
    %v175 = vmul.f32 %v55, %v95
    %v176 = vmul.f32 %v46, %v96
    %v177 = vmul.f32 %v47, %v97
    %v178 = vmul.f32 %v48, %v98
    %v179 = vmul.f32 %v49, %v99
    %v180 = vmul.f32 %v50, %v100
    %v181 = vmul.f32 %v51, %v101
    %v182 = vmul.f32 %v52, %v102
    %v183 = vmul.f32 %v53, %v103
    %v184 = vmul.f32 %v54, %v104
    %v185 = vmul.f32 %v55, %v105
    %v186 = vmul.f32 %v46, %v106
    %v187 = vmul.f32 %v47, %v107
    %v188 = vmul.f32 %v48, %v108
    %v189 = vmul.f32 %v49, %v109
    %v190 = vmul.f32 %v50, %v110
    %v191 = vmul.f32 %v51, %v111
    %v192 = vmul.f32 %v52, %v112
    %v193 = vmul.f32 %v53, %v113
    %v194 = vmul.f32 %v54, %v114
    %v195 = vmul.f32 %v55, %v115
    %v196 = vmul.f32 %v46, %v116
    %v197 = vmul.f32 %v47, %v117
    %v198 = vmul.f32 %v48, %v118
    %v199 = vmul.f32 %v49, %v119
    %v200 = vmul.f32 %v50, %v120
    %v201 = vmul.f32 %v51, %v121
    %v202 = vmul.f32 %v52, %v122
    %v203 = vmul.f32 %v53, %v123
    %v204 = vmul.f32 %v54, %v124
    %v205 = vmul.f32 %v55, %v125
    %v206 = vmul.f32 %v46, %v126
    %v207 = vmul.f32 %v47, %v127
    %v208 = vmul.f32 %v48, %v128
    %v209 = vmul.f32 %v49, %v129
    %v210 = vmul.f32 %v50, %v130
    %v211 = vmul.f32 %v51, %v131
    %v212 = vmul.f32 %v52, %v132
    %v213 = vmul.f32 %v53, %v133
    %v214 = vmul.f32 %v54, %v134
    %v215 = vmul.f32 %v55, %v135
    %v216 = vmul.f32 %v46, %v136
    %v217 = vmul.f32 %v47, %v137
    %v218 = vmul.f32 %v48, %v138
    %v219 = vmul.f32 %v49, %v139
    %v220 = vmul.f32 %v50, %v140
    %v221 = vmul.f32 %v51, %v141
    %v222 = vmul.f32 %v52, %v142
    %v223 = vmul.f32 %v53, %v143
    %v224 = vmul.f32 %v54, %v144
    %v225 = vmul.f32 %v55, %v145
    %v226 = vmul.f32 %v56, %v66
    %v227 = vmul.f32 %v57, %v67
    %v228 = vmul.f32 %v58, %v68
    %v229 = vmul.f32 %v59, %v69
    %v230 = vmul.f32 %v60, %v70
    %v231 = vmul.f32 %v61, %v71
    %v232 = vmul.f32 %v62, %v72
    %v233 = vmul.f32 %v63, %v73
    %v234 = vmul.f32 %v64, %v74
    %v235 = vmul.f32 %v65, %v75
    %v236 = vmul.f32 %v56, %v76
    %v237 = vmul.f32 %v57, %v77
    %v238 = vmul.f32 %v58, %v78
    %v239 = vmul.f32 %v59, %v79
    %v240 = vmul.f32 %v60, %v80
    %v241 = vmul.f32 %v61, %v81
    %v242 = vmul.f32 %v62, %v82
    %v243 = vmul.f32 %v63, %v83
    %v244 = vmul.f32 %v64, %v84
    %v245 = vmul.f32 %v65, %v85
    %v246 = vmul.f32 %v56, %v86
    %v247 = vmul.f32 %v57, %v87
    %v248 = vmul.f32 %v58, %v88
    %v249 = vmul.f32 %v59, %v89
    %v250 = vmul.f32 %v60, %v90
    %v251 = vmul.f32 %v61, %v91
    %v252 = vmul.f32 %v62, %v92
    %v253 = vmul.f32 %v63, %v93
    %v254 = vmul.f32 %v64, %v94
    %v255 = vmul.f32 %v65, %v95
    %v256 = vmul.f32 %v56, %v96
    %v257 = vmul.f32 %v57, %v97
    %v258 = vmul.f32 %v58, %v98
    %v259 = vmul.f32 %v59, %v99
    %v260 = vmul.f32 %v60, %v100
    %v261 = vmul.f32 %v61, %v101
    %v262 = vmul.f32 %v62, %v102
    %v263 = vmul.f32 %v63, %v103
    %v264 = vmul.f32 %v64, %v104
    %v265 = vmul.f32 %v65, %v105
    %v266 = vmul.f32 %v56, %v106
    %v267 = vmul.f32 %v57, %v107
    %v268 = vmul.f32 %v58, %v108
    %v269 = vmul.f32 %v59, %v109
    %v270 = vmul.f32 %v60, %v110
    %v271 = vmul.f32 %v61, %v111
    %v272 = vmul.f32 %v62, %v112
    %v273 = vmul.f32 %v63, %v113
    %v274 = vmul.f32 %v64, %v114
    %v275 = vmul.f32 %v65, %v115
    %v276 = vmul.f32 %v56, %v116
    %v277 = vmul.f32 %v57, %v117
    %v278 = vmul.f32 %v58, %v118
    %v279 = vmul.f32 %v59, %v119
    %v280 = vmul.f32 %v60, %v120
    %v281 = vmul.f32 %v61, %v121
    %v282 = vmul.f32 %v62, %v122
    %v283 = vmul.f32 %v63, %v123
    %v284 = vmul.f32 %v64, %v124
    %v285 = vmul.f32 %v65, %v125
    %v286 = vmul.f32 %v56, %v126
    %v287 = vmul.f32 %v57, %v127
    %v288 = vmul.f32 %v58, %v128
    %v289 = vmul.f32 %v59, %v129
    %v290 = vmul.f32 %v60, %v130
    %v291 = vmul.f32 %v61, %v131
    %v292 = vmul.f32 %v62, %v132
    %v293 = vmul.f32 %v63, %v133
    %v294 = vmul.f32 %v64, %v134
    %v295 = vmul.f32 %v65, %v135
    %v296 = vmul.f32 %v56, %v136
    %v297 = vmul.f32 %v57, %v137
    %v298 = vmul.f32 %v58, %v138
    %v299 = vmul.f32 %v59, %v139
    %v300 = vmul.f32 %v60, %v140
    %v301 = vmul.f32 %v61, %v141
    %v302 = vmul.f32 %v62, %v142
    %v303 = vmul.f32 %v63, %v143
    %v304 = vmul.f32 %v64, %v144
    %v305 = vmul.f32 %v65, %v145
    %v306 = vadd.f32 %v146, %v148
    %v307 = vadd.f32 %v306, %v150
    %v308 = vadd.f32 %v307, %v152
    %v309 = vadd.f32 %v308, %v154
    %v310 = vrot.slane %v309, 4
    %v311 = vadd.f32 %v309, %v310
    %v312 = vrot.slane %v311, 2
    %v313 = vadd.f32 %v311, %v312
    %v314 = vrot.slane %v313, 1
    %v315 = vadd.f32 %v313, %v314
    %v316 = vadd.f32 %v147, %v149
    %v317 = vadd.f32 %v316, %v151
    %v318 = vadd.f32 %v317, %v153
    %v319 = vadd.f32 %v318, %v155
    %v320 = vrot.slane %v319, 4
    %v321 = vadd.f32 %v319, %v320
    %v322 = vrot.slane %v321, 2
    %v323 = vadd.f32 %v321, %v322
    %v324 = vrot.slane %v323, 1
    %v325 = vadd.f32 %v323, %v324
    %v326 = vadd.f32 %v156, %v158
    %v327 = vadd.f32 %v326, %v160
    %v328 = vadd.f32 %v327, %v162
    %v329 = vadd.f32 %v328, %v164
    %v330 = vrot.slane %v329, 4
    %v331 = vadd.f32 %v329, %v330
    %v332 = vrot.slane %v331, 2
    %v333 = vadd.f32 %v331, %v332
    %v334 = vrot.slane %v333, 1
    %v335 = vadd.f32 %v333, %v334
    %v336 = vadd.f32 %v157, %v159
    %v337 = vadd.f32 %v336, %v161
    %v338 = vadd.f32 %v337, %v163
    %v339 = vadd.f32 %v338, %v165
    %v340 = vrot.slane %v339, 4
    %v341 = vadd.f32 %v339, %v340
    %v342 = vrot.slane %v341, 2
    %v343 = vadd.f32 %v341, %v342
    %v344 = vrot.slane %v343, 1
    %v345 = vadd.f32 %v343, %v344
    %v346 = vadd.f32 %v166, %v168
    %v347 = vadd.f32 %v346, %v170
    %v348 = vadd.f32 %v347, %v172
    %v349 = vadd.f32 %v348, %v174
    %v350 = vrot.slane %v349, 4
    %v351 = vadd.f32 %v349, %v350
    %v352 = vrot.slane %v351, 2
    %v353 = vadd.f32 %v351, %v352
    %v354 = vrot.slane %v353, 1
    %v355 = vadd.f32 %v353, %v354
    %v356 = vadd.f32 %v167, %v169
    %v357 = vadd.f32 %v356, %v171
    %v358 = vadd.f32 %v357, %v173
    %v359 = vadd.f32 %v358, %v175
    %v360 = vrot.slane %v359, 4
    %v361 = vadd.f32 %v359, %v360
    %v362 = vrot.slane %v361, 2
    %v363 = vadd.f32 %v361, %v362
    %v364 = vrot.slane %v363, 1
    %v365 = vadd.f32 %v363, %v364
    %v366 = vadd.f32 %v176, %v178
    %v367 = vadd.f32 %v366, %v180
    %v368 = vadd.f32 %v367, %v182
    %v369 = vadd.f32 %v368, %v184
    %v370 = vrot.slane %v369, 4
    %v371 = vadd.f32 %v369, %v370
    %v372 = vrot.slane %v371, 2
    %v373 = vadd.f32 %v371, %v372
    %v374 = vrot.slane %v373, 1
    %v375 = vadd.f32 %v373, %v374
    %v376 = vadd.f32 %v177, %v179
    %v377 = vadd.f32 %v376, %v181
    %v378 = vadd.f32 %v377, %v183
    %v379 = vadd.f32 %v378, %v185
    %v380 = vrot.slane %v379, 4
    %v381 = vadd.f32 %v379, %v380
    %v382 = vrot.slane %v381, 2
    %v383 = vadd.f32 %v381, %v382
    %v384 = vrot.slane %v383, 1
    %v385 = vadd.f32 %v383, %v384
    %v386 = vadd.f32 %v186, %v188
    %v387 = vadd.f32 %v386, %v190
    %v388 = vadd.f32 %v387, %v192
    %v389 = vadd.f32 %v388, %v194
    %v390 = vrot.slane %v389, 4
    %v391 = vadd.f32 %v389, %v390
    %v392 = vrot.slane %v391, 2
    %v393 = vadd.f32 %v391, %v392
    %v394 = vrot.slane %v393, 1
    %v395 = vadd.f32 %v393, %v394
    %v396 = vadd.f32 %v187, %v189
    %v397 = vadd.f32 %v396, %v191
    %v398 = vadd.f32 %v397, %v193
    %v399 = vadd.f32 %v398, %v195
    %v400 = vrot.slane %v399, 4
    %v401 = vadd.f32 %v399, %v400
    %v402 = vrot.slane %v401, 2
    %v403 = vadd.f32 %v401, %v402
    %v404 = vrot.slane %v403, 1
    %v405 = vadd.f32 %v403, %v404
    %v406 = vadd.f32 %v196, %v198
    %v407 = vadd.f32 %v406, %v200
    %v408 = vadd.f32 %v407, %v202
    %v409 = vadd.f32 %v408, %v204
    %v410 = vrot.slane %v409, 4
    %v411 = vadd.f32 %v409, %v410
    %v412 = vrot.slane %v411, 2
    %v413 = vadd.f32 %v411, %v412
    %v414 = vrot.slane %v413, 1
    %v415 = vadd.f32 %v413, %v414
    %v416 = vadd.f32 %v197, %v199
    %v417 = vadd.f32 %v416, %v201
    %v418 = vadd.f32 %v417, %v203
    %v419 = vadd.f32 %v418, %v205
    %v420 = vrot.slane %v419, 4
    %v421 = vadd.f32 %v419, %v420
    %v422 = vrot.slane %v421, 2
    %v423 = vadd.f32 %v421, %v422
    %v424 = vrot.slane %v423, 1
    %v425 = vadd.f32 %v423, %v424
    %v426 = vadd.f32 %v206, %v208
    %v427 = vadd.f32 %v426, %v210
    %v428 = vadd.f32 %v427, %v212
    %v429 = vadd.f32 %v428, %v214
    %v430 = vrot.slane %v429, 4
    %v431 = vadd.f32 %v429, %v430
    %v432 = vrot.slane %v431, 2
    %v433 = vadd.f32 %v431, %v432
    %v434 = vrot.slane %v433, 1
    %v435 = vadd.f32 %v433, %v434
    %v436 = vadd.f32 %v207, %v209
    %v437 = vadd.f32 %v436, %v211
    %v438 = vadd.f32 %v437, %v213
    %v439 = vadd.f32 %v438, %v215
    %v440 = vrot.slane %v439, 4
    %v441 = vadd.f32 %v439, %v440
    %v442 = vrot.slane %v441, 2
    %v443 = vadd.f32 %v441, %v442
    %v444 = vrot.slane %v443, 1
    %v445 = vadd.f32 %v443, %v444
    %v446 = vadd.f32 %v216, %v218
    %v447 = vadd.f32 %v446, %v220
    %v448 = vadd.f32 %v447, %v222
    %v449 = vadd.f32 %v448, %v224
    %v450 = vrot.slane %v449, 4
    %v451 = vadd.f32 %v449, %v450
    %v452 = vrot.slane %v451, 2
    %v453 = vadd.f32 %v451, %v452
    %v454 = vrot.slane %v453, 1
    %v455 = vadd.f32 %v453, %v454
    %v456 = vadd.f32 %v217, %v219
    %v457 = vadd.f32 %v456, %v221
    %v458 = vadd.f32 %v457, %v223
    %v459 = vadd.f32 %v458, %v225
    %v460 = vrot.slane %v459, 4
    %v461 = vadd.f32 %v459, %v460
    %v462 = vrot.slane %v461, 2
    %v463 = vadd.f32 %v461, %v462
    %v464 = vrot.slane %v463, 1
    %v465 = vadd.f32 %v463, %v464
    %v466 = vadd.f32 %v226, %v228
    %v467 = vadd.f32 %v466, %v230
    %v468 = vadd.f32 %v467, %v232
    %v469 = vadd.f32 %v468, %v234
    %v470 = vrot.slane %v469, 4
    %v471 = vadd.f32 %v469, %v470
    %v472 = vrot.slane %v471, 2
    %v473 = vadd.f32 %v471, %v472
    %v474 = vrot.slane %v473, 1
    %v475 = vadd.f32 %v473, %v474
    %v476 = vadd.f32 %v227, %v229
    %v477 = vadd.f32 %v476, %v231
    %v478 = vadd.f32 %v477, %v233
    %v479 = vadd.f32 %v478, %v235
    %v480 = vrot.slane %v479, 4
    %v481 = vadd.f32 %v479, %v480
    %v482 = vrot.slane %v481, 2
    %v483 = vadd.f32 %v481, %v482
    %v484 = vrot.slane %v483, 1
    %v485 = vadd.f32 %v483, %v484
    %v486 = vadd.f32 %v236, %v238
    %v487 = vadd.f32 %v486, %v240
    %v488 = vadd.f32 %v487, %v242
    %v489 = vadd.f32 %v488, %v244
    %v490 = vrot.slane %v489, 4
    %v491 = vadd.f32 %v489, %v490
    %v492 = vrot.slane %v491, 2
    %v493 = vadd.f32 %v491, %v492
    %v494 = vrot.slane %v493, 1
    %v495 = vadd.f32 %v493, %v494
    %v496 = vadd.f32 %v237, %v239
    %v497 = vadd.f32 %v496, %v241
    %v498 = vadd.f32 %v497, %v243
    %v499 = vadd.f32 %v498, %v245
    %v500 = vrot.slane %v499, 4
    %v501 = vadd.f32 %v499, %v500
    %v502 = vrot.slane %v501, 2
    %v503 = vadd.f32 %v501, %v502
    %v504 = vrot.slane %v503, 1
    %v505 = vadd.f32 %v503, %v504
    %v506 = vadd.f32 %v246, %v248
    %v507 = vadd.f32 %v506, %v250
    %v508 = vadd.f32 %v507, %v252
    %v509 = vadd.f32 %v508, %v254
    %v510 = vrot.slane %v509, 4
    %v511 = vadd.f32 %v509, %v510
    %v512 = vrot.slane %v511, 2
    %v513 = vadd.f32 %v511, %v512
    %v514 = vrot.slane %v513, 1
    %v515 = vadd.f32 %v513, %v514
    %v516 = vadd.f32 %v247, %v249
    %v517 = vadd.f32 %v516, %v251
    %v518 = vadd.f32 %v517, %v253
    %v519 = vadd.f32 %v518, %v255
    %v520 = vrot.slane %v519, 4
    %v521 = vadd.f32 %v519, %v520
    %v522 = vrot.slane %v521, 2
    %v523 = vadd.f32 %v521, %v522
    %v524 = vrot.slane %v523, 1
    %v525 = vadd.f32 %v523, %v524
    %v526 = vadd.f32 %v256, %v258
    %v527 = vadd.f32 %v526, %v260
    %v528 = vadd.f32 %v527, %v262
    %v529 = vadd.f32 %v528, %v264
    %v530 = vrot.slane %v529, 4
    %v531 = vadd.f32 %v529, %v530
    %v532 = vrot.slane %v531, 2
    %v533 = vadd.f32 %v531, %v532
    %v534 = vrot.slane %v533, 1
    %v535 = vadd.f32 %v533, %v534
    %v536 = vadd.f32 %v257, %v259
    %v537 = vadd.f32 %v536, %v261
    %v538 = vadd.f32 %v537, %v263
    %v539 = vadd.f32 %v538, %v265
    %v540 = vrot.slane %v539, 4
    %v541 = vadd.f32 %v539, %v540
    %v542 = vrot.slane %v541, 2
    %v543 = vadd.f32 %v541, %v542
    %v544 = vrot.slane %v543, 1
    %v545 = vadd.f32 %v543, %v544
    %v546 = vadd.f32 %v266, %v268
    %v547 = vadd.f32 %v546, %v270
    %v548 = vadd.f32 %v547, %v272
    %v549 = vadd.f32 %v548, %v274
    %v550 = vrot.slane %v549, 4
    %v551 = vadd.f32 %v549, %v550
    %v552 = vrot.slane %v551, 2
    %v553 = vadd.f32 %v551, %v552
    %v554 = vrot.slane %v553, 1
    %v555 = vadd.f32 %v553, %v554
    %v556 = vadd.f32 %v267, %v269
    %v557 = vadd.f32 %v556, %v271
    %v558 = vadd.f32 %v557, %v273
    %v559 = vadd.f32 %v558, %v275
    %v560 = vrot.slane %v559, 4
    %v561 = vadd.f32 %v559, %v560
    %v562 = vrot.slane %v561, 2
    %v563 = vadd.f32 %v561, %v562
    %v564 = vrot.slane %v563, 1
    %v565 = vadd.f32 %v563, %v564
    %v566 = vadd.f32 %v276, %v278
    %v567 = vadd.f32 %v566, %v280
    %v568 = vadd.f32 %v567, %v282
    %v569 = vadd.f32 %v568, %v284
    %v570 = vrot.slane %v569, 4
    %v571 = vadd.f32 %v569, %v570
    %v572 = vrot.slane %v571, 2
    %v573 = vadd.f32 %v571, %v572
    %v574 = vrot.slane %v573, 1
    %v575 = vadd.f32 %v573, %v574
    %v576 = vadd.f32 %v277, %v279
    %v577 = vadd.f32 %v576, %v281
    %v578 = vadd.f32 %v577, %v283
    %v579 = vadd.f32 %v578, %v285
    %v580 = vrot.slane %v579, 4
    %v581 = vadd.f32 %v579, %v580
    %v582 = vrot.slane %v581, 2
    %v583 = vadd.f32 %v581, %v582
    %v584 = vrot.slane %v583, 1
    %v585 = vadd.f32 %v583, %v584
    %v586 = vadd.f32 %v286, %v288
    %v587 = vadd.f32 %v586, %v290
    %v588 = vadd.f32 %v587, %v292
    %v589 = vadd.f32 %v588, %v294
    %v590 = vrot.slane %v589, 4
    %v591 = vadd.f32 %v589, %v590
    %v592 = vrot.slane %v591, 2
    %v593 = vadd.f32 %v591, %v592
    %v594 = vrot.slane %v593, 1
    %v595 = vadd.f32 %v593, %v594
    %v596 = vadd.f32 %v287, %v289
    %v597 = vadd.f32 %v596, %v291
    %v598 = vadd.f32 %v597, %v293
    %v599 = vadd.f32 %v598, %v295
    %v600 = vrot.slane %v599, 4
    %v601 = vadd.f32 %v599, %v600
    %v602 = vrot.slane %v601, 2
    %v603 = vadd.f32 %v601, %v602
    %v604 = vrot.slane %v603, 1
    %v605 = vadd.f32 %v603, %v604
    %v606 = vadd.f32 %v296, %v298
    %v607 = vadd.f32 %v606, %v300
    %v608 = vadd.f32 %v607, %v302
    %v609 = vadd.f32 %v608, %v304
    %v610 = vrot.slane %v609, 4
    %v611 = vadd.f32 %v609, %v610
    %v612 = vrot.slane %v611, 2
    %v613 = vadd.f32 %v611, %v612
    %v614 = vrot.slane %v613, 1
    %v615 = vadd.f32 %v613, %v614
    %v616 = vadd.f32 %v297, %v299
    %v617 = vadd.f32 %v616, %v301
    %v618 = vadd.f32 %v617, %v303
    %v619 = vadd.f32 %v618, %v305
    %v620 = vrot.slane %v619, 4
    %v621 = vadd.f32 %v619, %v620
    %v622 = vrot.slane %v621, 2
    %v623 = vadd.f32 %v621, %v622
    %v624 = vrot.slane %v623, 1
    %v625 = vadd.f32 %v623, %v624
    %vm658 = vcmask 1041409
    %v659 = vsel %vm658, %v335, %v315
    %vm660 = vcmask 1042434
    %v661 = vsel %vm660, %v355, %v659
    %vm662 = vcmask 1043459
    %v663 = vsel %vm662, %v375, %v661
    %vm664 = vcmask 1044484
    %v665 = vsel %vm664, %v395, %v663
    %vm666 = vcmask 1045509
    %v667 = vsel %vm666, %v415, %v665
    %vm668 = vcmask 1046534
    %v669 = vsel %vm668, %v435, %v667
    %vm670 = vcmask 1047559
    %v671 = vsel %vm670, %v455, %v669
    %v672 = vsel %vm658, %v345, %v325
    %v673 = vsel %vm660, %v365, %v672
    %v674 = vsel %vm662, %v385, %v673
    %v675 = vsel %vm664, %v405, %v674
    %v676 = vsel %vm666, %v425, %v675
    %v677 = vsel %vm668, %v445, %v676
    %v678 = vsel %vm670, %v465, %v677
    %v679 = vsel %vm658, %v495, %v475
    %v680 = vsel %vm660, %v515, %v679
    %v681 = vsel %vm662, %v535, %v680
    %v682 = vsel %vm664, %v555, %v681
    %v683 = vsel %vm666, %v575, %v682
    %v684 = vsel %vm668, %v595, %v683
    %v685 = vsel %vm670, %v615, %v684
    %v686 = vsel %vm658, %v505, %v485
    %v687 = vsel %vm660, %v525, %v686
    %v688 = vsel %vm662, %v545, %v687
    %v689 = vsel %vm664, %v565, %v688
    %v690 = vsel %vm666, %v585, %v689
    %v691 = vsel %vm668, %v605, %v690
    %v692 = vsel %vm670, %v625, %v691
    %v697 = vadd.f32 %v671, %v678
    %698 = vadd.xlane.f32.xlu0 %v697
    %v699 = vpop.xlane.xlu0 %698
    %v700 = vadd.f32 %v685, %v692
    %701 = vadd.xlane.f32.xlu0 %v700
    %v702 = vpop.xlane.xlu0 %701
    %v703 = vadd.f32 %v699, %v702
    %v704 = vmul.f32 %v703, 0.001953125
    %v705 = vmul.f32 %v315, %v315
    %v706 = vmul.f32 %v325, %v325
    %v707 = vmul.f32 %v335, %v335
    %v708 = vmul.f32 %v345, %v345
    %v709 = vmul.f32 %v355, %v355
    %v710 = vmul.f32 %v365, %v365
    %v711 = vmul.f32 %v375, %v375
    %v712 = vmul.f32 %v385, %v385
    %v713 = vmul.f32 %v395, %v395
    %v714 = vmul.f32 %v405, %v405
    %v715 = vmul.f32 %v415, %v415
    %v716 = vmul.f32 %v425, %v425
    %v717 = vmul.f32 %v435, %v435
    %v718 = vmul.f32 %v445, %v445
    %v719 = vmul.f32 %v455, %v455
    %v720 = vmul.f32 %v465, %v465
    %v721 = vmul.f32 %v475, %v475
    %v722 = vmul.f32 %v485, %v485
    %v723 = vmul.f32 %v495, %v495
    %v724 = vmul.f32 %v505, %v505
    %v725 = vmul.f32 %v515, %v515
    %v726 = vmul.f32 %v525, %v525
    %v727 = vmul.f32 %v535, %v535
    %v728 = vmul.f32 %v545, %v545
    %v729 = vmul.f32 %v555, %v555
    %v730 = vmul.f32 %v565, %v565
    %v731 = vmul.f32 %v575, %v575
    %v732 = vmul.f32 %v585, %v585
    %v733 = vmul.f32 %v595, %v595
    %v734 = vmul.f32 %v605, %v605
    %v735 = vmul.f32 %v615, %v615
    %v736 = vmul.f32 %v625, %v625
    %v769 = vsel %vm658, %v707, %v705
    %v770 = vsel %vm660, %v709, %v769
    %v771 = vsel %vm662, %v711, %v770
    %v772 = vsel %vm664, %v713, %v771
    %v773 = vsel %vm666, %v715, %v772
    %v774 = vsel %vm668, %v717, %v773
    %v775 = vsel %vm670, %v719, %v774
    %v776 = vsel %vm658, %v708, %v706
    %v777 = vsel %vm660, %v710, %v776
    %v778 = vsel %vm662, %v712, %v777
    %v779 = vsel %vm664, %v714, %v778
    %v780 = vsel %vm666, %v716, %v779
    %v781 = vsel %vm668, %v718, %v780
    %v782 = vsel %vm670, %v720, %v781
    %v783 = vsel %vm658, %v723, %v721
    %v784 = vsel %vm660, %v725, %v783
    %v785 = vsel %vm662, %v727, %v784
    %v786 = vsel %vm664, %v729, %v785
    %v787 = vsel %vm666, %v731, %v786
    %v788 = vsel %vm668, %v733, %v787
    %v789 = vsel %vm670, %v735, %v788
    %v790 = vsel %vm658, %v724, %v722
    %v791 = vsel %vm660, %v726, %v790
    %v792 = vsel %vm662, %v728, %v791
    %v793 = vsel %vm664, %v730, %v792
    %v794 = vsel %vm666, %v732, %v793
    %v795 = vsel %vm668, %v734, %v794
    %v796 = vsel %vm670, %v736, %v795
    %v801 = vadd.f32 %v775, %v782
    %802 = vadd.xlane.f32.xlu0 %v801
    %v803 = vpop.xlane.xlu0 %802
    %v804 = vadd.f32 %v789, %v796
    %805 = vadd.xlane.f32.xlu0 %v804
    %v806 = vpop.xlane.xlu0 %805
    %v807 = vadd.f32 %v803, %v806
    %v808 = vmul.f32 %v807, 0.001953125
    %v809 = vmul.f32 %v704, %v704
    %v810 = vsub.f32 %v808, %v809
    %v811 = vmax.f32 %v810, 0.0
    %v812 = vadd.f32 %v811, 1e-05
    %v813 = vrsqrt.pop %v812
    %v814 = vld [vmem:[%s0] sm:$0xff]
    %v815 = vmul.f32 %v813, %v814
    %v816 = vld [vmem:[%s1] sm:$0xff]
    %v817 = vmul.f32 %v704, %v815
    %v818 = vsub.f32 %v816, %v817
    %820 = vset.pattern.permute.xlu0 0
    %821 = vperm.xlu0 %820, %v815
    %v822 = vpop.permute.xlu0 %821
    %v823 = vrot.slane %v822, 1
    %v824 = vrot.slane %v822, 2
    %v825 = vrot.slane %v822, 3
    %v826 = vrot.slane %v822, 4
    %v827 = vrot.slane %v822, 5
    %v828 = vrot.slane %v822, 6
    %v829 = vrot.slane %v822, 7
    %v838 = vmul.f32 %v315, %v822
    %v839 = vmul.f32 %v325, %v822
    %v840 = vmul.f32 %v335, %v823
    %v841 = vmul.f32 %v345, %v823
    %v842 = vmul.f32 %v355, %v824
    %v843 = vmul.f32 %v365, %v824
    %v844 = vmul.f32 %v375, %v825
    %v845 = vmul.f32 %v385, %v825
    %v846 = vmul.f32 %v395, %v826
    %v847 = vmul.f32 %v405, %v826
    %v848 = vmul.f32 %v415, %v827
    %v849 = vmul.f32 %v425, %v827
    %v850 = vmul.f32 %v435, %v828
    %v851 = vmul.f32 %v445, %v828
    %v852 = vmul.f32 %v455, %v829
    %v853 = vmul.f32 %v465, %v829
    %v854 = vmul.f32 %v475, %v822
    %v855 = vmul.f32 %v485, %v822
    %v856 = vmul.f32 %v495, %v823
    %v857 = vmul.f32 %v505, %v823
    %v858 = vmul.f32 %v515, %v824
    %v859 = vmul.f32 %v525, %v824
    %v860 = vmul.f32 %v535, %v825
    %v861 = vmul.f32 %v545, %v825
    %v862 = vmul.f32 %v555, %v826
    %v863 = vmul.f32 %v565, %v826
    %v864 = vmul.f32 %v575, %v827
    %v865 = vmul.f32 %v585, %v827
    %v866 = vmul.f32 %v595, %v828
    %v867 = vmul.f32 %v605, %v828
    %v868 = vmul.f32 %v615, %v829
    %v869 = vmul.f32 %v625, %v829
    %871 = vset.pattern.permute.xlu0 0
    %872 = vperm.xlu0 %871, %v818
    %v873 = vpop.permute.xlu0 %872
    %v874 = vrot.slane %v873, 1
    %v875 = vrot.slane %v873, 2
    %v876 = vrot.slane %v873, 3
    %v877 = vrot.slane %v873, 4
    %v878 = vrot.slane %v873, 5
    %v879 = vrot.slane %v873, 6
    %v880 = vrot.slane %v873, 7
    %v889 = vadd.f32 %v838, %v873
    %v890 = vadd.f32 %v839, %v873
    %v891 = vadd.f32 %v840, %v874
    %v892 = vadd.f32 %v841, %v874
    %v893 = vadd.f32 %v842, %v875
    %v894 = vadd.f32 %v843, %v875
    %v895 = vadd.f32 %v844, %v876
    %v896 = vadd.f32 %v845, %v876
    %v897 = vadd.f32 %v846, %v877
    %v898 = vadd.f32 %v847, %v877
    %v899 = vadd.f32 %v848, %v878
    %v900 = vadd.f32 %v849, %v878
    %v901 = vadd.f32 %v850, %v879
    %v902 = vadd.f32 %v851, %v879
    %v903 = vadd.f32 %v852, %v880
    %v904 = vadd.f32 %v853, %v880
    %v905 = vadd.f32 %v854, %v873
    %v906 = vadd.f32 %v855, %v873
    %v907 = vadd.f32 %v856, %v874
    %v908 = vadd.f32 %v857, %v874
    %v909 = vadd.f32 %v858, %v875
    %v910 = vadd.f32 %v859, %v875
    %v911 = vadd.f32 %v860, %v876
    %v912 = vadd.f32 %v861, %v876
    %v913 = vadd.f32 %v862, %v877
    %v914 = vadd.f32 %v863, %v877
    %v915 = vadd.f32 %v864, %v878
    %v916 = vadd.f32 %v865, %v878
    %v917 = vadd.f32 %v866, %v879
    %v918 = vadd.f32 %v867, %v879
    %v919 = vadd.f32 %v868, %v880
    %v920 = vadd.f32 %v869, %v880
    %v921 = vmax.f32 %v889, 0.0
    %v922 = vmax.f32 %v890, 0.0
    %v923 = vmax.f32 %v891, 0.0
    %v924 = vmax.f32 %v892, 0.0
    %v925 = vmax.f32 %v893, 0.0
    %v926 = vmax.f32 %v894, 0.0
    %v927 = vmax.f32 %v895, 0.0
    %v928 = vmax.f32 %v896, 0.0
    %v929 = vmax.f32 %v897, 0.0
    %v930 = vmax.f32 %v898, 0.0
    %v931 = vmax.f32 %v899, 0.0
    %v932 = vmax.f32 %v900, 0.0
    %v933 = vmax.f32 %v901, 0.0
    %v934 = vmax.f32 %v902, 0.0
    %v935 = vmax.f32 %v903, 0.0
    %v936 = vmax.f32 %v904, 0.0
    %v937 = vmax.f32 %v905, 0.0
    %v938 = vmax.f32 %v906, 0.0
    %v939 = vmax.f32 %v907, 0.0
    %v940 = vmax.f32 %v908, 0.0
    %v941 = vmax.f32 %v909, 0.0
    %v942 = vmax.f32 %v910, 0.0
    %v943 = vmax.f32 %v911, 0.0
    %v944 = vmax.f32 %v912, 0.0
    %v945 = vmax.f32 %v913, 0.0
    %v946 = vmax.f32 %v914, 0.0
    %v947 = vmax.f32 %v915, 0.0
    %v948 = vmax.f32 %v916, 0.0
    %v949 = vmax.f32 %v917, 0.0
    %v950 = vmax.f32 %v918, 0.0
    %v951 = vmax.f32 %v919, 0.0
    %v952 = vmax.f32 %v920, 0.0
    %v985 = vrot.slane %v923, 7
    %v986 = vsel %vm658, %v985, %v921
    %v987 = vrot.slane %v925, 6
    %v988 = vsel %vm660, %v987, %v986
    %v989 = vrot.slane %v927, 5
    %v990 = vsel %vm662, %v989, %v988
    %v991 = vrot.slane %v929, 4
    %v992 = vsel %vm664, %v991, %v990
    %v993 = vrot.slane %v931, 3
    %v994 = vsel %vm666, %v993, %v992
    %v995 = vrot.slane %v933, 2
    %v996 = vsel %vm668, %v995, %v994
    %v997 = vrot.slane %v935, 1
    %v998 = vsel %vm670, %v997, %v996
    %v999 = vrot.slane %v924, 7
    %v1000 = vsel %vm658, %v999, %v922
    %v1001 = vrot.slane %v926, 6
    %v1002 = vsel %vm660, %v1001, %v1000
    %v1003 = vrot.slane %v928, 5
    %v1004 = vsel %vm662, %v1003, %v1002
    %v1005 = vrot.slane %v930, 4
    %v1006 = vsel %vm664, %v1005, %v1004
    %v1007 = vrot.slane %v932, 3
    %v1008 = vsel %vm666, %v1007, %v1006
    %v1009 = vrot.slane %v934, 2
    %v1010 = vsel %vm668, %v1009, %v1008
    %v1011 = vrot.slane %v936, 1
    %v1012 = vsel %vm670, %v1011, %v1010
    %v1013 = vrot.slane %v939, 7
    %v1014 = vsel %vm658, %v1013, %v937
    %v1015 = vrot.slane %v941, 6
    %v1016 = vsel %vm660, %v1015, %v1014
    %v1017 = vrot.slane %v943, 5
    %v1018 = vsel %vm662, %v1017, %v1016
    %v1019 = vrot.slane %v945, 4
    %v1020 = vsel %vm664, %v1019, %v1018
    %v1021 = vrot.slane %v947, 3
    %v1022 = vsel %vm666, %v1021, %v1020
    %v1023 = vrot.slane %v949, 2
    %v1024 = vsel %vm668, %v1023, %v1022
    %v1025 = vrot.slane %v951, 1
    %v1026 = vsel %vm670, %v1025, %v1024
    %v1027 = vrot.slane %v940, 7
    %v1028 = vsel %vm658, %v1027, %v938
    %v1029 = vrot.slane %v942, 6
    %v1030 = vsel %vm660, %v1029, %v1028
    %v1031 = vrot.slane %v944, 5
    %v1032 = vsel %vm662, %v1031, %v1030
    %v1033 = vrot.slane %v946, 4
    %v1034 = vsel %vm664, %v1033, %v1032
    %v1035 = vrot.slane %v948, 3
    %v1036 = vsel %vm666, %v1035, %v1034
    %v1037 = vrot.slane %v950, 2
    %v1038 = vsel %vm668, %v1037, %v1036
    %v1039 = vrot.slane %v952, 1
    %v1040 = vsel %vm670, %v1039, %v1038
    %1045 = vst [vmem:[#allocation7] sm:$0xff] %v998
    %1046 = vst [vmem:[#allocation7 + $0x8] sm:$0xff] %v1012
    %1047 = vst [vmem:[#allocation7 + $0x10] sm:$0xff] %v1026
    %1048 = vst [vmem:[#allocation7 + $0x18] sm:$0xff] %v1040
    // Predicated region
    $region26: #{tpu_custom_call.1} parent=1 // pred_check
      _
    $region27: #{tpu_custom_call.1} parent=1 // pred_check_branch
      %1050 = sbr.rel (0) target = $region29
    $region28: #{tpu_custom_call.1} parent=1 // pred_region
      %s1052 = ssub.s32 512, 512
      %1053 = vsyncadd [#allocation4], %s1052
      %s1054 = sshll.u32 [#allocation7], 4
      %s1055 = int_to_ptr.vmem [resolvable:$true] %s1054
      %1060 = dma.vmem_to_hbm [thread:$0]  %s1055, 512, %s4, [#allocation4], 256, 256, 16
    $region29: #{tpu_custom_call.1} parent=1 // pred_fallthru
      _
    // Predicated region
    $region30: #{tpu_custom_call.1} parent=1 // pred_check
      _
    $region31: #{tpu_custom_call.1} parent=1 // pred_check_branch
      %1062 = sbr.rel (0) target = $region33
    $region32: #{tpu_custom_call.1} parent=1 // pred_region
      %1063 = dma.done [#allocation4], 512
    $region33: #{tpu_custom_call.1} parent=1 // pred_fallthru
      _
    %1064 = vsyncpa [#allocation3], 1
    %1065 = vsyncpa [#allocation6], 1
    %1066 = vsyncpa [#allocation4], 1

</llo_original>
